<compile_context>
chip_gen: v7x
topology: tpu7x:2x2x1
jax: 0.10.0
libtpu: 0.0.40
codegen_flags: <defaults>
</compile_context>

<pallas_src>
import math

import numpy as np
import jax
import jax.numpy as jnp
from jax.experimental import pallas as pl
from jax.experimental.pallas import tpu as pltpu


# -----------------------------------------------------------------------------
# Host-side preprocessing (numpy) -- faithful port of the PyTorch helpers.
# The reference module itself converts tensors to numpy for this part.
# -----------------------------------------------------------------------------
def _l2_normalize_np(x, eps=1e-5):
    norm = np.linalg.norm(x, axis=1, keepdims=True)
    return x / (norm + eps)


def _ccw_sorted_angle_vertices(edges, pos):
    u, v = edges[:, 0], edges[:, 1]
    diff = pos[v] - pos[u]
    diff_normalized = _l2_normalize_np(diff)
    cos = diff_normalized @ np.array([[1.0], [0.0]])
    radian = (np.arccos(np.clip(cos, -1.0, 1.0))
              * np.expand_dims(np.sign(diff[:, 1]), axis=1)).ravel()
    # Stable vectorized sort by (u, radian).  Replaces the Python
    # sorted(..., key=lambda) which failed on numpy>=2 and dominated wall clock
    # for large edge counts.
    sorted_idx = np.lexsort((radian, u))
    sorted_v = v[sorted_idx]
    idx = np.unique(u, return_index=True)[1]
    roll_idx = np.arange(1, len(u) + 1)
    roll_idx[np.roll(idx - 1, -1)] = idx
    rolled_v = sorted_v[roll_idx]
    return np.stack([u, sorted_v, rolled_v]).T[sorted_v != rolled_v]


# -----------------------------------------------------------------------------
# Pallas kernel
# -----------------------------------------------------------------------------
def _acos_f32(x):
    # Mosaic has no direct acos lowering; Abramowitz & Stegun 4.4.46
    # (|err| <= 2e-8, i.e. float32 precision) evaluated on the VPU.
    ax = jnp.abs(x)
    p = jnp.float32(-0.0012624911)
    for c in (0.0066700901, -0.0170881256, 0.0308918810,
              -0.0501743046, 0.0889789874, -0.2145988016, 1.5707963050):
        p = p * ax + jnp.float32(c)
    r = jnp.sqrt(jnp.maximum(jnp.float32(1.0) - ax, jnp.float32(0.0))) * p
    return jnp.where(x >= 0, r, jnp.float32(math.pi) - r)


def incident_angle_kernel(packed_ref, onehot_ref, out_ref):
    # packed_ref: (8, TA)   rows: ux, uy, v1x, v1y, v2x, v2y, phi, <pad>
    # onehot_ref: (TA, G_pad) onehot[a, g] = 1 iff angle a is valid and in graph g
    # out_ref:    (8, G_pad)  resident accumulator across the grid (row 0 is the answer)
    @pl.when(pl.program_id(0) == 0)
    def _():
        out_ref[...] = jnp.zeros_like(out_ref)

    p = packed_ref[...]                      # one sublane-dense load
    ux, uy = p[0:1, :], p[1:2, :]
    e1x = p[2:3, :] - ux
    e1y = p[3:4, :] - uy
    e2x = p[4:5, :] - ux
    e2y = p[5:6, :] - uy
    phi = p[6:7, :]                          # 2*pi / degree, precomputed on host

    s1 = e1x * e1x + e1y * e1y
    s2 = e2x * e2x + e2y * e2y
    dot = e1x * e2x + e1y * e2y
    # Single EUP rsqrt instead of two sqrts + one divide; eps keeps padded
    # (all-zero) lanes finite so they can't poison the matmul with NaNs.
    cos_t = jnp.clip(dot * jax.lax.rsqrt(s1 * s2 + jnp.float32(1e-12)),
                     -1.0, 1.0)
    theta = _acos_f32(cos_t)                 # (1, TA)
    angle_l1 = jnp.abs(phi - theta)          # (1, TA)

    # Per-graph scatter-add as an MXU matmul against the host-built one-hot.
    # Broadcast to 8 sublanes to keep a native (8, K) x (K, 128) MXU shape;
    # the redundant rows are free (MXU is otherwise idle) and row 0 is used.
    lhs = jnp.broadcast_to(angle_l1, (8, angle_l1.shape[1]))
    out_ref[...] += jnp.dot(lhs, onehot_ref[...],
                            preferred_element_type=jnp.float32)


# -----------------------------------------------------------------------------
# Wrapper: IncidentAngle.forward with reduce = mean
# -----------------------------------------------------------------------------
def incident_angle_forward(node_pos, raw_edge_index, batch_vec):
    pos_np = np.asarray(node_pos, dtype=np.float32)
    real_edges = np.asarray(raw_edge_index).T                 # (E, 2)
    angles = _ccw_sorted_angle_vertices(real_edges, pos_np)   # (A, 3)
    u, v1, v2 = angles[:, 0], angles[:, 1], angles[:, 2]

    # node degrees (same contiguity assumption as the original module)
    _, counts = np.unique(real_edges[:, 0], return_counts=True)
    degrees = counts[u].astype(np.float32)
    phi = (2.0 * np.pi / degrees).astype(np.float32)          # host-side precompute
    gid = np.asarray(batch_vec)[u].astype(np.int32)
    G = int(gid.max()) + 1                                    # torch_scatter dim

    A = len(u)
    LANE = 128
    MAX_TA = 4096                                             # big lane tile; VMEM is not binding
    a_rounded = max(LANE, ((A + LANE - 1) // LANE) * LANE)
    TA = min(MAX_TA, a_rounded)
    A_pad = ((A + TA - 1) // TA) * TA                         # pad only to the tile multiple
    G_pad = ((G + LANE - 1) // LANE) * LANE                   # lane-dense accumulator

    # One sublane-dense slab: 7 data rows + 1 pad row.
    packed = np.zeros((8, A_pad), dtype=np.float32)
    packed[0, :A] = pos_np[u, 0]
    packed[1, :A] = pos_np[u, 1]
    packed[2, :A] = pos_np[v1, 0]
    packed[3, :A] = pos_np[v1, 1]
    packed[4, :A] = pos_np[v2, 0]
    packed[5, :A] = pos_np[v2, 1]
    packed[6, :A] = phi

    # One-hot scatter matrix; padded angle rows stay all-zero (= validity mask).
    onehot = np.zeros((A_pad, G_pad), dtype=np.float32)
    onehot[np.arange(A), gid] = 1.0

    out = pl.pallas_call(
        incident_angle_kernel,
        out_shape=jax.ShapeDtypeStruct((8, G_pad), jnp.float32),
        grid=(A_pad // TA,),
        in_specs=[pl.BlockSpec((8, TA), lambda k: (0, k)),
                  pl.BlockSpec((TA, G_pad), lambda k: (k, 0))],
        out_specs=pl.BlockSpec((8, G_pad), lambda k: (0, 0)),
        compiler_params=pltpu.CompilerParams(
            dimension_semantics=("arbitrary",)),
    )(jnp.asarray(packed), jnp.asarray(onehot))

    graph_l1 = out[0, :G]
    return jnp.mean(graph_l1), graph_l1


# -----------------------------------------------------------------------------
# Numpy reference (same math, no Pallas) for a sanity check.
# -----------------------------------------------------------------------------
def _reference(node_pos, raw_edge_index, batch_vec):
    pos = np.asarray(node_pos, dtype=np.float32)
    real_edges = np.asarray(raw_edge_index).T
    angles = _ccw_sorted_angle_vertices(real_edges, pos)
    u, v1, v2 = angles[:, 0], angles[:, 1], angles[:, 2]
    e1 = _l2_normalize_np(pos[v1] - pos[u])
    e2 = _l2_normalize_np(pos[v2] - pos[u])
    theta = np.arccos(np.clip((e1 * e2).sum(axis=1), -1.0, 1.0))
    _, counts = np.unique(real_edges[:, 0], return_counts=True)
    phi = 2.0 * np.pi / counts[u].astype(np.float32)
    angle_l1 = np.abs(phi - theta)
    gid = np.asarray(batch_vec)[u]
    G = int(gid.max()) + 1
    graph_l1 = np.zeros(G, dtype=np.float64)
    np.add.at(graph_l1, gid, angle_l1)
    return graph_l1.mean(), graph_l1


if __name__ == "__main__":
    # Synthetic "batch": 2 graphs, 9 nodes total, undirected edges stored in
    # both directions (PyG-style raw_edge_index of shape (2, E)).
    und0 = [(0, 1), (1, 2), (2, 3), (3, 4), (4, 0), (0, 2)]      # graph 0: 5 nodes
    und1 = [(5, 6), (5, 7), (5, 8), (6, 7), (6, 8), (7, 8)]      # graph 1: K4
    directed = []
    for a, b in und0 + und1:
        directed.append((a, b))
        directed.append((b, a))
    directed.sort()                                              # sorted by source node
    real_edges = np.array(directed, dtype=np.int64)              # (24, 2)
    raw_edge_index = real_edges.T                                # (2, 24)
    batch_vec = np.array([0] * 5 + [1] * 4, dtype=np.int64)      # node -> graph id

    node_pos = jax.random.normal(jax.random.PRNGKey(0), (9, 2), dtype=jnp.float32)

    out_mean, out_per_graph = incident_angle_forward(node_pos, raw_edge_index, batch_vec)
    out_mean = jax.block_until_ready(out_mean)
    out_per_graph = jax.block_until_ready(out_per_graph)

    ref_mean, ref_per_graph = _reference(node_pos, raw_edge_index, batch_vec)
    np.testing.assert_allclose(np.asarray(out_per_graph), ref_per_graph,
                               rtol=1e-3, atol=1e-3)
    np.testing.assert_allclose(float(out_mean), float(ref_mean),
                               rtol=1e-3, atol=1e-3)
    print("KERNEL_OK")
</pallas_src>

<mosaic_0001>
module attributes {stable_mosaic.version = 11 : i64} {
  func.func @incident_angle_kernel(%arg0: i32, %arg1: memref<8x128xf32, #tpu.memory_space<vmem>>, %arg2: memref<128x128xf32, #tpu.memory_space<vmem>>, %arg3: memref<8x128xf32, #tpu.memory_space<vmem>>) attributes {dimension_semantics = [#tpu.dimension_semantics<arbitrary>], iteration_bounds = array<i64: 1>, scalar_prefetch = 0 : i64, scratch_operands = 0 : i64, tpu.core_type = #tpu.core_type<tc>, window_params = [{transform_indices = @transform_0, window_bounds = array<i64: 8, 128>}, {transform_indices = @transform_1, window_bounds = array<i64: 128, 128>}, {pipeline_mode = #tpu.pipeline_mode<synchronous>, transform_indices = @transform_2, window_bounds = array<i64: 8, 128>}]} {
    %c0_i32 = arith.constant 0 : i32
    %0 = arith.cmpi eq, %arg0, %c0_i32 : i32
    %1 = arith.extui %0 : i1 to i32
    %c0_i32_0 = arith.constant 0 : i32
    %2 = arith.cmpi ne, %1, %c0_i32_0 : i32
    scf.if %2 {
      %cst_23 = arith.constant 0.000000e+00 : f32
      %76 = vector.broadcast %cst_23 : f32 to vector<8x128xf32>
      %c0_24 = arith.constant 0 : index
      %c0_25 = arith.constant 0 : index
      %77 = vector.load %arg3[%c0_24, %c0_25] : memref<8x128xf32, #tpu.memory_space<vmem>>, vector<8x128xf32>
      tpu.vector_store %arg3[%c0_24, %c0_25], %76 {strides = array<i32>} : memref<8x128xf32, #tpu.memory_space<vmem>>, vector<8x128xf32>,
    } else {
    }
    %c0 = arith.constant 0 : index
    %c0_1 = arith.constant 0 : index
    %3 = vector.load %arg1[%c0, %c0_1] : memref<8x128xf32, #tpu.memory_space<vmem>>, vector<8x128xf32>
    %4 = vector.extract_strided_slice %3 {offsets = [0, 0], sizes = [1, 128], strides = [1, 1]} : vector<8x128xf32> to vector<1x128xf32>
    %5 = vector.extract_strided_slice %3 {offsets = [1, 0], sizes = [1, 128], strides = [1, 1]} : vector<8x128xf32> to vector<1x128xf32>
    %6 = vector.extract_strided_slice %3 {offsets = [2, 0], sizes = [1, 128], strides = [1, 1]} : vector<8x128xf32> to vector<1x128xf32>
    %7 = arith.subf %6, %4 : vector<1x128xf32>
    %8 = vector.extract_strided_slice %3 {offsets = [3, 0], sizes = [1, 128], strides = [1, 1]} : vector<8x128xf32> to vector<1x128xf32>
    %9 = arith.subf %8, %5 : vector<1x128xf32>
    %10 = vector.extract_strided_slice %3 {offsets = [4, 0], sizes = [1, 128], strides = [1, 1]} : vector<8x128xf32> to vector<1x128xf32>
    %11 = arith.subf %10, %4 : vector<1x128xf32>
    %12 = vector.extract_strided_slice %3 {offsets = [5, 0], sizes = [1, 128], strides = [1, 1]} : vector<8x128xf32> to vector<1x128xf32>
    %13 = arith.subf %12, %5 : vector<1x128xf32>
    %14 = vector.extract_strided_slice %3 {offsets = [6, 0], sizes = [1, 128], strides = [1, 1]} : vector<8x128xf32> to vector<1x128xf32>
    %15 = arith.mulf %7, %7 : vector<1x128xf32>
    %16 = arith.mulf %9, %9 : vector<1x128xf32>
    %17 = arith.addf %15, %16 : vector<1x128xf32>
    %18 = arith.mulf %11, %11 : vector<1x128xf32>
    %19 = arith.mulf %13, %13 : vector<1x128xf32>
    %20 = arith.addf %18, %19 : vector<1x128xf32>
    %21 = arith.mulf %7, %11 : vector<1x128xf32>
    %22 = arith.mulf %9, %13 : vector<1x128xf32>
    %23 = arith.addf %21, %22 : vector<1x128xf32>
    %24 = arith.mulf %17, %20 : vector<1x128xf32>
    %cst = arith.constant 9.99999996E-13 : f32
    %25 = vector.broadcast %cst : f32 to vector<1x128xf32>
    %26 = arith.addf %24, %25 : vector<1x128xf32>
    %27 = math.rsqrt %26 : vector<1x128xf32>
    %28 = arith.mulf %23, %27 : vector<1x128xf32>
    %cst_2 = arith.constant -1.000000e+00 : f32
    %cst_3 = arith.constant 1.000000e+00 : f32
    %29 = vector.broadcast %cst_2 : f32 to vector<1x128xf32>
    %30 = arith.maximumf %29, %28 : vector<1x128xf32>
    %31 = vector.broadcast %cst_3 : f32 to vector<1x128xf32>
    %32 = arith.minimumf %31, %30 : vector<1x128xf32>
    %33 = math.absf %32 : vector<1x128xf32>
    %cst_4 = arith.constant -0.0012624911 : f32
    %34 = vector.broadcast %cst_4 : f32 to vector<1x128xf32>
    %35 = arith.mulf %34, %33 : vector<1x128xf32>
    %cst_5 = arith.constant 6.670090e-03 : f32
    %36 = vector.broadcast %cst_5 : f32 to vector<1x128xf32>
    %37 = arith.addf %35, %36 : vector<1x128xf32>
    %38 = arith.mulf %37, %33 : vector<1x128xf32>
    %cst_6 = arith.constant -0.0170881264 : f32
    %39 = vector.broadcast %cst_6 : f32 to vector<1x128xf32>
    %40 = arith.addf %38, %39 : vector<1x128xf32>
    %41 = arith.mulf %40, %33 : vector<1x128xf32>
    %cst_7 = arith.constant 0.0308918804 : f32
    %42 = vector.broadcast %cst_7 : f32 to vector<1x128xf32>
    %43 = arith.addf %41, %42 : vector<1x128xf32>
    %44 = arith.mulf %43, %33 : vector<1x128xf32>
    %cst_8 = arith.constant -0.0501743034 : f32
    %45 = vector.broadcast %cst_8 : f32 to vector<1x128xf32>
    %46 = arith.addf %44, %45 : vector<1x128xf32>
    %47 = arith.mulf %46, %33 : vector<1x128xf32>
    %cst_9 = arith.constant 0.0889789909 : f32
    %48 = vector.broadcast %cst_9 : f32 to vector<1x128xf32>
    %49 = arith.addf %47, %48 : vector<1x128xf32>
    %50 = arith.mulf %49, %33 : vector<1x128xf32>
    %cst_10 = arith.constant -0.214598805 : f32
    %51 = vector.broadcast %cst_10 : f32 to vector<1x128xf32>
    %52 = arith.addf %50, %51 : vector<1x128xf32>
    %53 = arith.mulf %52, %33 : vector<1x128xf32>
    %cst_11 = arith.constant 1.57079625 : f32
    %54 = vector.broadcast %cst_11 : f32 to vector<1x128xf32>
    %55 = arith.addf %53, %54 : vector<1x128xf32>
    %cst_12 = arith.constant 1.000000e+00 : f32
    %56 = vector.broadcast %cst_12 : f32 to vector<1x128xf32>
    %57 = arith.subf %56, %33 : vector<1x128xf32>
    %cst_13 = arith.constant 0.000000e+00 : f32
    %58 = vector.broadcast %cst_13 : f32 to vector<1x128xf32>
    %59 = arith.maximumf %57, %58 : vector<1x128xf32>
    %60 = math.sqrt %59 : vector<1x128xf32>
    %61 = arith.mulf %60, %55 : vector<1x128xf32>
    %cst_14 = arith.constant 0.000000e+00 : f32
    %62 = vector.broadcast %cst_14 : f32 to vector<1x128xf32>
    %63 = arith.cmpf oge, %32, %62 : vector<1x128xf32>
    %cst_15 = arith.constant 3.14159274 : f32
    %64 = vector.broadcast %cst_15 : f32 to vector<1x128xf32>
    %65 = arith.subf %64, %61 : vector<1x128xf32>
    %66 = arith.select %63, %61, %65 : vector<1x128xi1>, vector<1x128xf32>
    %67 = arith.subf %14, %66 : vector<1x128xf32>
    %68 = math.absf %67 : vector<1x128xf32>
    %69 = vector.shape_cast %68 : vector<1x128xf32> to vector<1x128xf32>
    %70 = vector.broadcast %69 : vector<1x128xf32> to vector<8x128xf32>
    %c0_16 = arith.constant 0 : index
    %c0_17 = arith.constant 0 : index
    %71 = vector.load %arg3[%c0_16, %c0_17] : memref<8x128xf32, #tpu.memory_space<vmem>>, vector<8x128xf32>
    %c0_18 = arith.constant 0 : index
    %c0_19 = arith.constant 0 : index
    %72 = vector.load %arg2[%c0_18, %c0_19] : memref<128x128xf32, #tpu.memory_space<vmem>>, vector<128x128xf32>
    %cst_20 = arith.constant dense<0.000000e+00> : vector<8x128xf32>
    %73 = tpu.matmul %70, %72, %cst_20 {dimension_numbers = #tpu.dot_dimension_numbers<[1], [0], [0], [1], [0, 0, 1, 1], [], []>} : vector<8x128xf32>, vector<128x128xf32>, vector<8x128xf32> -> vector<8x128xf32>
    %74 = arith.addf %71, %73 : vector<8x128xf32>
    %c0_21 = arith.constant 0 : index
    %c0_22 = arith.constant 0 : index
    %75 = vector.load %arg3[%c0_21, %c0_22] : memref<8x128xf32, #tpu.memory_space<vmem>>, vector<8x128xf32>
    tpu.vector_store %arg3[%c0_21, %c0_22], %74 {strides = array<i32>} : memref<8x128xf32, #tpu.memory_space<vmem>>, vector<8x128xf32>,
    return
  }
  func.func @transform_0(%arg0: i32) -> (i32, i32) {
    %c0_i32 = arith.constant 0 : i32
    %c0_i32_0 = arith.constant 0 : i32
    return %c0_i32, %arg0 : i32, i32
  }
  func.func @transform_1(%arg0: i32) -> (i32, i32) {
    %c0_i32 = arith.constant 0 : i32
    %c0_i32_0 = arith.constant 0 : i32
    return %arg0, %c0_i32 : i32, i32
  }
  func.func @transform_2(%arg0: i32) -> (i32, i32) {
    %c0_i32 = arith.constant 0 : i32
    %c0_i32_0 = arith.constant 0 : i32
    %c0_i32_1 = arith.constant 0 : i32
    return %c0_i32, %c0_i32_0 : i32, i32
  }
}

</mosaic_0001>

<llo_original>
// kernel: tpu_custom_call.1
$region0: #{tpu_custom_call.1}
  #allocation0 [shape = 'u32[]', space=smem, size = 0x4, offset = 0x4, fixed_abs, tag = 'smem constant byte address 0x4 - core index']
  #allocation1 [shape = 'u32[144,128]{1,0:T(1,128)}', space=vmem, size = 0x12000, scoped, tag = 'internal scratch']
  %s0 = inlined_call_operand.hbm [shape: f32[8,128], index: 0, kind: input, shape index: {}]
  %s1 = inlined_call_operand.hbm [shape: f32[128,128], index: 1, kind: input, shape index: {}]
  %s2 = inlined_call_operand.hbm [shape: f32[8,128], index: 2, kind: output, shape index: {}]
  %s3 = sld [smem:[#allocation0]]
  $region30: #{tpu_custom_call.1} parent=0
    _
  %s5 = ssub.s32 1, %s3
  %s6 = scalar_select 0, %s5, %s3
  $region1: #{tpu_custom_call.1} parent=0
    #allocation2 [shape = 'u8[4096]{0}', space=vmem, size = 0x1000, scoped, tag = 'input window, operand 0, single buffered']
    #allocation3 [shape = 's32[1]{0}', space=sflag, size = 0x4, scoped, tag = 'scoped memory for tpu_custom_call.1']
    #allocation4 [shape = 's32[1]{0}', space=sflag, size = 0x4, scoped, tag = 'scoped memory for tpu_custom_call.1']
    #allocation5 [shape = 'u8[65536]{0}', space=vmem, size = 0x10000, scoped, tag = 'input window, operand 1, single buffered']
    #allocation6 [shape = 's32[1]{0}', space=sflag, size = 0x4, scoped, tag = 'scoped memory for tpu_custom_call.1']
    #allocation7 [shape = 'u8[4096]{0}', space=vmem, size = 0x1000, scoped, tag = 'output window, operand 0, single buffered']
    %7 = vsyncpa [#allocation3], 0
    %8 = vsyncpa [#allocation6], 0
    %9 = vsyncpa [#allocation4], 0
    // Predicated region
    $region2: #{tpu_custom_call.1} parent=1 // pred_check
      _
    $region3: #{tpu_custom_call.1} parent=1 // pred_check_branch
      %11 = sbr.rel (0) target = $region5
    $region4: #{tpu_custom_call.1} parent=1 // pred_region
      %s13 = ssub.s32 128, 128
      %14 = vsyncadd [#allocation3], %s13
      %s16 = sshll.u32 [#allocation2], 4
      %s17 = int_to_ptr.vmem [resolvable:$true] %s16
      %19 = dma.hbm_to_vmem [thread:$0]  %s0, 128, %s17, [#allocation3]
    $region5: #{tpu_custom_call.1} parent=1 // pred_fallthru
      _
    // Predicated region
    $region6: #{tpu_custom_call.1} parent=1 // pred_check
      _
    $region7: #{tpu_custom_call.1} parent=1 // pred_check_branch
      %21 = sbr.rel (0) target = $region9
    $region8: #{tpu_custom_call.1} parent=1 // pred_region
      %s23 = ssub.s32 2048, 2048
      %24 = vsyncadd [#allocation6], %s23
      %s25 = sshll.u32 [#allocation5], 4
      %s26 = int_to_ptr.vmem [resolvable:$true] %s25
      %31 = dma.hbm_to_vmem [thread:$0]  %s1, 2048, %s26, [#allocation6], 128, 128, 8
    $region9: #{tpu_custom_call.1} parent=1 // pred_fallthru
      _
    // Predicated region
    $region10: #{tpu_custom_call.1} parent=1 // pred_check
      _
    $region11: #{tpu_custom_call.1} parent=1 // pred_check_branch
      %33 = sbr.rel (0) target = $region13
    $region12: #{tpu_custom_call.1} parent=1 // pred_region
      %34 = dma.done [#allocation3], 128
    $region13: #{tpu_custom_call.1} parent=1 // pred_fallthru
      _
    // Predicated region
    $region14: #{tpu_custom_call.1} parent=1 // pred_check
      _
    $region15: #{tpu_custom_call.1} parent=1 // pred_check_branch
      %36 = sbr.rel (0) target = $region17
    $region16: #{tpu_custom_call.1} parent=1 // pred_region
      %37 = dma.done [#allocation6], 2048
    $region17: #{tpu_custom_call.1} parent=1 // pred_fallthru
      _
    %p38 = scmp.eq.s32.totalorder 0, 0
    // Predicated region
    $region18: #{tpu_custom_call.1} parent=1 // pred_check
      %p39 = pneg %p38
    $region19: #{tpu_custom_call.1} parent=1 // pred_check_branch
      %41 = sbr.rel (%p39) target = $region21
    $region20: #{tpu_custom_call.1} parent=1 // pred_region
      %42 = vst [vmem:[#allocation7] sm:$0xff] 0.0
    $region21: #{tpu_custom_call.1} parent=1 // pred_fallthru
      _
    %v43 = vld [vmem:[#allocation2] sm:$0xff]
    %v45 = vrot.slane %v43, 6
    %v47 = vsub.f32 %v43, %v45
    %v48 = vrot.slane %v43, 4
    %v50 = vsub.f32 %v43, %v48
    %v51 = vmul.f32 %v47, %v47
    %v53 = vrot.slane %v51, 1
    %v55 = vadd.f32 %v51, %v53
    %v56 = vmul.f32 %v50, %v50
    %v58 = vrot.slane %v56, 1
    %v60 = vadd.f32 %v56, %v58
    %v62 = vrot.slane %v50, 2
    %v64 = vmul.f32 %v47, %v62
    %v66 = vrot.slane %v64, 1
    %v68 = vadd.f32 %v64, %v66
    %v70 = vrot.slane %v60, 2
    %v72 = vmul.f32 %v55, %v70
    %v73 = vadd.f32 %v72, 1e-12
    %v74 = vrsqrt.pop %v73
    %v75 = vmul.f32 %v68, %v74
    %v76 = vmax.f32 %v75, -1.0
    %v77 = vmin.f32 %v76, 1.0
    %v78 = vand.u32 2147483647, %v77
    %v79 = vmul.f32 %v78, -0.0012624911
    %v80 = vadd.f32 %v79, 0.00667009
    %v81 = vmul.f32 %v80, %v78
    %v82 = vadd.f32 %v81, -0.017088126
    %v83 = vmul.f32 %v82, %v78
    %v84 = vadd.f32 %v83, 0.03089188
    %v85 = vmul.f32 %v84, %v78
    %v86 = vadd.f32 %v85, -0.050174303
    %v87 = vmul.f32 %v86, %v78
    %v88 = vadd.f32 %v87, 0.08897899
    %v89 = vmul.f32 %v88, %v78
    %v90 = vadd.f32 %v89, -0.2145988
    %v91 = vmul.f32 %v90, %v78
    %v92 = vadd.f32 %v91, 1.5707963
    %v93 = vsub.f32 1.0, %v78
    %v94 = vmax.f32 %v93, 0.0
    %v95 = vrsqrt.pop %v94
    %v96 = vmul.f32 %v94, %v95
    %vm97 = vcmp.eq.f32.partialorder %v94, inf
    %v98 = vsel %vm97, %v94, %v96
    %vm99 = vcmp.eq.f32.partialorder %v94, 0.0
    %v100 = vand.u32 %v94, 2147483648
    %v101 = vsel %vm99, %v100, %v98
    %v102 = vmul.f32 %v101, %v92
    %vm103 = vcmp.ge.f32.partialorder %v77, 0.0
    %v104 = vsub.f32 3.1415927, %v102
    %v105 = vsel %vm103, %v102, %v104
    %v107 = vrot.slane %v105, 4
    %v109 = vsub.f32 %v43, %v107
    %v110 = vand.u32 2147483647, %v109
    %v111 = vlaneseq
    %v112 = vshrl.u32 %v111, 7
    %v113 = vsub.s32 6, %v112
    %v114 = vrot.slane %v110, %v113
    %v115 = vld [vmem:[#allocation7] sm:$0xff]
    %v116 = vld [vmem:[#allocation5] sm:$0xff]
    %v117 = vld [vmem:[#allocation5 + $0x8] sm:$0xff]
    %v118 = vld [vmem:[#allocation5 + $0x10] sm:$0xff]
    %v119 = vld [vmem:[#allocation5 + $0x18] sm:$0xff]
    %v120 = vld [vmem:[#allocation5 + $0x20] sm:$0xff]
    %v121 = vld [vmem:[#allocation5 + $0x28] sm:$0xff]
    %v122 = vld [vmem:[#allocation5 + $0x30] sm:$0xff]
    %v123 = vld [vmem:[#allocation5 + $0x38] sm:$0xff]
    %v124 = vld [vmem:[#allocation5 + $0x40] sm:$0xff]
    %v125 = vld [vmem:[#allocation5 + $0x48] sm:$0xff]
    %v126 = vld [vmem:[#allocation5 + $0x50] sm:$0xff]
    %v127 = vld [vmem:[#allocation5 + $0x58] sm:$0xff]
    %v128 = vld [vmem:[#allocation5 + $0x60] sm:$0xff]
    %v129 = vld [vmem:[#allocation5 + $0x68] sm:$0xff]
    %v130 = vld [vmem:[#allocation5 + $0x70] sm:$0xff]
    %v131 = vld [vmem:[#allocation5 + $0x78] sm:$0xff]
    %132 = vmatprep.subr.mxu0 0.0
    %133 = vmatpush1.msra.mxu0 %v116
    %134 = vmatprep.subr.mxu0 0.0
    %135 = vmatpush1.msra.mxu0 %v117
    %136 = vmatprep.subr.mxu0 0.0
    %137 = vmatpush1.msra.mxu0 %v118
    %138 = vmatprep.subr.mxu0 0.0
    %139 = vmatpush1.msra.mxu0 %v119
    %140 = vmatprep.subr.mxu0 0.0
    %141 = vmatpush1.msra.mxu0 %v120
    %142 = vmatprep.subr.mxu0 0.0
    %143 = vmatpush1.msra.mxu0 %v121
    %144 = vmatprep.subr.mxu0 0.0
    %145 = vmatpush1.msra.mxu0 %v122
    %146 = vmatprep.subr.mxu0 0.0
    %147 = vmatpush1.msra.mxu0 %v123
    %148 = vmatprep.subr.mxu0 0.0
    %149 = vmatpush1.msra.mxu0 %v124
    %150 = vmatprep.subr.mxu0 0.0
    %151 = vmatpush1.msra.mxu0 %v125
    %152 = vmatprep.subr.mxu0 0.0
    %153 = vmatpush1.msra.mxu0 %v126
    %154 = vmatprep.subr.mxu0 0.0
    %155 = vmatpush1.msra.mxu0 %v127
    %156 = vmatprep.subr.mxu0 0.0
    %157 = vmatpush1.msra.mxu0 %v128
    %158 = vmatprep.subr.mxu0 0.0
    %159 = vmatpush1.msra.mxu0 %v129
    %160 = vmatprep.subr.mxu0 0.0
    %161 = vmatpush1.msra.mxu0 %v130
    %162 = vmatprep.subr.mxu0 0.0
    %163 = vmatpush1.msra.mxu0 %v131
    %164 = vmatprep.subr.mxu0 0.0
    %165 = vmatpush1.msra.mxu0 0.0
    %166 = vmatprep.subr.mxu0 0.0
    %167 = vmatpush1.msra.mxu0 0.0
    %168 = vmatprep.subr.mxu0 0.0
    %169 = vmatpush1.msra.mxu0 0.0
    %170 = vmatprep.subr.mxu0 0.0
    %171 = vmatpush1.msra.mxu0 0.0
    %172 = vmatprep.subr.mxu0 0.0
    %173 = vmatpush1.msra.mxu0 0.0
    %174 = vmatprep.subr.mxu0 0.0
    %175 = vmatpush1.msra.mxu0 0.0
    %176 = vmatprep.subr.mxu0 0.0
    %177 = vmatpush1.msra.mxu0 0.0
    %178 = vmatprep.subr.mxu0 0.0
    %179 = vmatpush1.msra.mxu0 0.0
    %180 = vmatprep.subr.mxu0 0.0
    %181 = vmatpush1.msra.mxu0 0.0
    %182 = vmatprep.subr.mxu0 0.0
    %183 = vmatpush1.msra.mxu0 0.0
    %184 = vmatprep.subr.mxu0 0.0
    %185 = vmatpush1.msra.mxu0 0.0
    %186 = vmatprep.subr.mxu0 0.0
    %187 = vmatpush1.msra.mxu0 0.0
    %188 = vmatprep.subr.mxu0 0.0
    %189 = vmatpush1.msra.mxu0 0.0
    %190 = vmatprep.subr.mxu0 0.0
    %191 = vmatpush1.msra.mxu0 0.0
    %192 = vmatprep.subr.mxu0 0.0
    %193 = vmatpush1.msra.mxu0 0.0
    %194 = vmatprep.subr.mxu0 0.0
    %195 = vmatpush1.msra.mxu0 0.0
    %196 = vmatprep.mubr.f32.mxu0 0.0
    %197 = vmatmul.mubr.f32.gmra.mrb[0].mxu0 %v114
    %v198 = vpop.f32.mrb[0].mxu0
    %v199 = vadd.f32 0.0, %v198
    %v200 = vpop.f32.mrb[0].mxu0
    %201 = vdwg.mxu0
    %v202 = vadd.f32 %v115, %v199
    %203 = vst [vmem:[#allocation7] sm:$0xff] %v202
    // Predicated region
    $region22: #{tpu_custom_call.1} parent=1 // pred_check
      _
    $region23: #{tpu_custom_call.1} parent=1 // pred_check_branch
      %205 = sbr.rel (0) target = $region25
    $region24: #{tpu_custom_call.1} parent=1 // pred_region
      %s207 = ssub.s32 128, 128
      %208 = vsyncadd [#allocation4], %s207
      %s210 = sshll.u32 [#allocation7], 4
      %s211 = int_to_ptr.vmem [resolvable:$true] %s210
      %213 = dma.vmem_to_hbm [thread:$0]  %s211, 128, %s2, [#allocation4]
    $region25: #{tpu_custom_call.1} parent=1 // pred_fallthru
      _
    // Predicated region
    $region26: #{tpu_custom_call.1} parent=1 // pred_check
      _
    $region27: #{tpu_custom_call.1} parent=1 // pred_check_branch
      %215 = sbr.rel (0) target = $region29
    $region28: #{tpu_custom_call.1} parent=1 // pred_region
      %216 = dma.done [#allocation4], 128
    $region29: #{tpu_custom_call.1} parent=1 // pred_fallthru
      _
    %217 = vsyncpa [#allocation3], 1
    %218 = vsyncpa [#allocation6], 1
    %219 = vsyncpa [#allocation4], 1

</llo_original>
